<compile_context>
chip_gen: v5e
topology: v5e:2x2
jax: 0.10.0
libtpu: 0.0.40
codegen_flags: <defaults>
</compile_context>

<pallas_src>
import functools

import jax
import jax.numpy as jnp
from jax.experimental import pallas as pl
from jax.experimental.pallas import tpu as pltpu


# ------------------------------- kernels ------------------------------------
def _make_pll_kernel(losstype, eps=1e-7, q=0.7, lw_weight0=1.0, lw_weight=2.0):
    """Returns a Pallas kernel computing the per-sample PLL loss for one tile.

    Kernel signatures (inputs only contain what the loss actually reads):
      cc/ce/gce : (x_ref, y_ref, loss_ref)
      rc_*      : (x_ref, c_ref, loss_ref)
      lw_lw     : (x_ref, y_ref, c_ref, loss_ref)
    """
    inv_q = 1.0 / q

    if losstype in ('cc', 'ce', 'gce'):

        def kernel(x_ref, y_ref, loss_ref):
            x = x_ref[...].astype(jnp.float32)          # [tb, C] logits
            y = y_ref[...].astype(jnp.float32)          # [tb, C] partial labels (0/1)
            m = jnp.max(x, axis=-1, keepdims=True)
            z = x - m
            ez = jnp.exp(z)
            se = jnp.sum(ez, axis=-1, keepdims=True)
            lse = jnp.log(se)                           # per-row, cheap
            if losstype == 'cc':
                # -log(sum(softmax*y)) == log(se) - log(sum(ez*y)); exact, no divide.
                loss_ref[...] = lse - jnp.log(jnp.sum(ez * y, axis=-1, keepdims=True))
            elif losstype == 'ce':
                # -sum((z - lse)*y) == lse*sum(y) - sum(z*y); no full-width log_softmax.
                loss_ref[...] = (lse * jnp.sum(y, axis=-1, keepdims=True)
                                 - jnp.sum(z * y, axis=-1, keepdims=True))
            else:  # 'gce'
                # p**q == exp(q*(z - lse)): one extra full-width exp instead of
                # power(p+eps, q) == exp(q*log(p+eps)) plus the softmax divide.
                # (Semantic diff vs (p+eps)**q only when p underflows; bounded by
                # eps**q ~ 1.3e-5 per candidate class.)
                pq = jnp.exp(q * (z - lse))
                masked = jnp.where(y > 0.0, (1.0 - pq) * inv_q, eps)
                loss_ref[...] = jnp.sum(masked, axis=-1, keepdims=True)

    elif losstype in ('rc_rc', 'rc_cav'):

        def kernel(x_ref, c_ref, loss_ref):
            x = x_ref[...].astype(jnp.float32)          # [tb, C] logits
            c = c_ref[...].astype(jnp.float32)          # [tb, C] conf rows (conf[index])
            m = jnp.max(x, axis=-1, keepdims=True)
            z = x - m
            se = jnp.sum(jnp.exp(z), axis=-1, keepdims=True)
            lse = jnp.log(se)
            # -sum((z - lse)*c) == lse*sum(c) - sum(z*c)   (sum(c) == 1 in practice).
            loss_ref[...] = (lse * jnp.sum(c, axis=-1, keepdims=True)
                             - jnp.sum(z * c, axis=-1, keepdims=True))

    elif losstype == 'lw_lw':

        def kernel(x_ref, y_ref, c_ref, loss_ref):
            x = x_ref[...].astype(jnp.float32)
            y = y_ref[...].astype(jnp.float32)
            c = c_ref[...].astype(jnp.float32)
            m = jnp.max(x, axis=-1, keepdims=True)
            z = x - m
            ez = jnp.exp(z)
            se = jnp.sum(ez, axis=-1, keepdims=True)
            p = ez * pl.reciprocal(se, approx=True)     # EUP slot; ~1e-3 rel err
            onezero = jnp.where(y > 0.0, 1.0, 0.0)
            counter = 1.0 - onezero
            # clamp: approx reciprocal can push p a hair above 1.0 -> log(<0) NaN
            one_minus_p = jnp.maximum(1.0 - p, 0.0)
            l1 = c * onezero * (-jnp.log(p + eps))
            l2 = c * counter * (-jnp.log(one_minus_p + eps))
            loss_ref[...] = (lw_weight0 * jnp.sum(l1, axis=-1, keepdims=True)
                             + lw_weight * jnp.sum(l2, axis=-1, keepdims=True))

    else:
        raise ValueError(f'unsupported loss type: {losstype}')

    return kernel


# Rough count of f32 [tile_b, C] temporaries the body needs (VMEM budgeting).
_N_TEMPS = {'cc': 4, 'ce': 4, 'gce': 5, 'rc_rc': 4, 'rc_cav': 4, 'lw_lw': 9}


# ------------------------------- wrapper -------------------------------------
def _round_up(v, m):
    return ((v + m - 1) // m) * m


def _vmem_capacity_bytes():
    """Per-core VMEM capacity; conservative fallback (v7x per-TC) if unknown."""
    try:
        return int(pltpu.get_tpu_info().vmem_capacity_bytes)
    except Exception:
        return 64 * 1024 * 1024


def _choose_tiling(B, C, itemsizes, n_temps):
    """Pick the batch tile and a footprint-derived vmem limit (all static)."""
    cap = _vmem_capacity_bytes()
    budget = min(cap // 4, 24 * 1024 * 1024)        # generation-aware tile budget
    # double-buffered input tiles + f32 intermediates in the body, per row
    bytes_per_row = sum(2 * it for it in itemsizes) * C + n_temps * 4 * C + 16

    tile = 2048
    while tile > 32 and tile * bytes_per_row > budget:
        tile //= 2
    # don't tile far wider than the batch (saves VMEM, no perf cost)
    while tile > 32 and tile >= 2 * _round_up(B, 8):
        tile //= 2
    # keep >= 2 grid steps when the batch allows (both v7x TensorCores busy) ...
    while tile > 256 and -(-B // tile) < 2:
        tile //= 2
    # ... and prefer an even step count on small grids (odd small grids leave
    # one of v7x's two cores under-used; harmless on 1-TC chips).
    steps = -(-B // tile)
    while tile > 64 and 1 < steps < 16 and steps % 2 == 1:
        tile //= 2
        steps = -(-B // tile)

    # footprint-derived VMEM limit (instead of a blanket 48 MiB)
    footprint = tile * bytes_per_row
    vmem_limit = max(footprint + footprint // 2 + (2 << 20), 16 << 20)
    vmem_limit = min(vmem_limit, (cap * 3) // 4)
    return tile, int(vmem_limit)


@functools.partial(jax.jit, static_argnames=('losstype', 'reduce'))
def pll_loss_pallas(x, y, conf_rows, losstype, reduce=True):
    """Per-sample (or mean) PLL loss computed with a Pallas TPU kernel.

    x:         [B, C] logits (native dtype, e.g. bf16; upcast to f32 in-kernel)
    y:         [B, C] partial labels (0/1 mask), native dtype
    conf_rows: [B, C] confidence rows conf[index] (only read for '_' types),
               or None for 'cc'/'ce'/'gce'.
    """
    B, C = x.shape

    # Only the operands this loss type actually reads (cuts HBM traffic).
    if losstype in ('cc', 'ce', 'gce'):
        arrays = [x, y]
    elif losstype in ('rc_rc', 'rc_cav'):
        arrays = [x, conf_rows]
    elif losstype == 'lw_lw':
        arrays = [x, y, conf_rows]
    else:
        raise ValueError(f'unsupported loss type: {losstype}')

    itemsizes = [jnp.dtype(a.dtype).itemsize for a in arrays]
    tile_b, vmem_limit = _choose_tiling(B, C, itemsizes, _N_TEMPS[losstype])

    kernel = _make_pll_kernel(losstype)
    n_in = len(arrays)

    # Ragged grid: no wrapper-side jnp.pad.  Rows are independent, so garbage
    # in the remainder input block only produces garbage in output rows that
    # Pallas never writes back (exp overflow -> inf/NaN there is harmless).
    # TODO(synk): output stays [tile_b, 1] (masked vst on the last dim); input
    # DMA dominates at realistic C, so a lane-dense output layout isn't worth
    # the in-kernel transpose.
    # TODO(synk): for very large C (tens of thousands) add a second 'arbitrary'
    # grid axis over classes with online-softmax accumulation in VMEM scratch.
    loss2d = pl.pallas_call(
        kernel,
        out_shape=jax.ShapeDtypeStruct((B, 1), jnp.float32),
        grid_spec=pltpu.PrefetchScalarGridSpec(
            num_scalar_prefetch=0,
            grid=(pl.cdiv(B, tile_b),),
            in_specs=[pl.BlockSpec((tile_b, C), lambda i: (i, 0))
                      for _ in range(n_in)],
            out_specs=pl.BlockSpec((tile_b, 1), lambda i: (i, 0)),
        ),
        compiler_params=pltpu.CompilerParams(
            dimension_semantics=("parallel",),
            vmem_limit_bytes=vmem_limit),
    )(*arrays)

    loss = loss2d[:, 0]
    if reduce:
        loss = jnp.mean(loss)
    return loss


class PLLLossPallas:
    """Thin JAX/Pallas port of the PyTorch PLL_loss module (forward only)."""

    def __init__(self, type=None, PartialY=None, eps=1e-7, conf_dtype=jnp.bfloat16):
        self.eps = eps
        self.losstype = type
        self.T = 1
        if '_' in type:
            # conf stored in bf16: values are row-normalized partial labels
            # (exact for power-of-two candidate counts, <~0.4% rounding otherwise);
            # halves the conf[index] gather intermediate and the kernel's read.
            self.conf = self.init_confidence(PartialY).astype(conf_dtype)
        if 'gce' in type:
            self.q = 0.7
        if 'lw' in type:
            self.lw_weight = 2
            self.lw_weight0 = 1

    @staticmethod
    def init_confidence(PartialY):
        tempY = jnp.sum(PartialY, axis=1, keepdims=True)
        return (PartialY / tempY).astype(jnp.float32)

    def __call__(self, x, y, index=None, reduce=True):
        # x and y are fed in their native dtypes; the kernel upcasts to f32.
        if '_' in self.losstype:
            conf_rows = self.conf[index, :]      # gather: plain JAX glue (bf16 rows)
        else:
            conf_rows = None                     # cc/ce/gce never touch conf
        return pll_loss_pallas(x, y, conf_rows,
                               losstype=self.losstype, reduce=reduce)

    # TODO(synk): confidence-update paths (check_conf_update / update_confidence /
    # cal_pred_conf / clean_conf) are training-time state mutation, not part of
    # the forward pass; not ported to Pallas.


# ------------------------- pure-JAX reference (sanity check) -----------------
def _reference_loss(x, y, conf_rows, losstype, eps=1e-7, q=0.7):
    x = x.astype(jnp.float32)
    p = jax.nn.softmax(x, axis=1)
    logp = jax.nn.log_softmax(x, axis=1)
    y = y.astype(jnp.float32)
    if losstype == 'cc':
        return -jnp.log(jnp.sum(p * y, axis=1))
    if losstype == 'ce':
        return -jnp.sum(logp * y, axis=1)
    if losstype == 'gce':
        masked = jnp.where(y > 0, (1.0 - jnp.power(p + eps, q)) / q, eps)
        return jnp.sum(masked, axis=1)
    if losstype in ('rc_rc', 'rc_cav'):
        return -jnp.sum(logp * conf_rows.astype(jnp.float32), axis=1)
    if losstype == 'lw_lw':
        onezero = (y > 0).astype(jnp.float32)
        c = conf_rows.astype(jnp.float32)
        l1 = c * onezero * (-jnp.log(p + eps))
        l2 = c * (1.0 - onezero) * (-jnp.log(1.0 - p + eps))
        return 1.0 * jnp.sum(l1, axis=1) + 2.0 * jnp.sum(l2, axis=1)
    raise ValueError(losstype)


if __name__ == "__main__":
    key = jax.random.PRNGKey(0)
    B, C, N_total = 10, 128, 64   # batch not a tile multiple -> exercises ragged grid

    k1, k2, k3, k4 = jax.random.split(key, 4)

    # logits
    x = jax.random.normal(k1, (B, C), dtype=jnp.float32)

    # partial labels for the whole "dataset" (at least one positive per row)
    PartialY_all = (jax.random.uniform(k2, (N_total, C)) < 0.1).astype(jnp.float32)
    true_lbl_all = jax.random.randint(k3, (N_total,), 0, C)
    PartialY_all = PartialY_all.at[jnp.arange(N_total), true_lbl_all].set(1.0)

    # batch indices and the batch's partial labels
    index = jax.random.randint(k4, (B,), 0, N_total)
    y = PartialY_all[index]

    ok = True
    for losstype in ['cc', 'ce', 'gce', 'rc_rc', 'rc_cav', 'lw_lw']:
        loss_fn = PLLLossPallas(type=losstype, PartialY=PartialY_all)

        per_sample = loss_fn(x, y, index, reduce=False)
        mean_loss = loss_fn(x, y, index, reduce=True)
        jax.block_until_ready(per_sample)
        jax.block_until_ready(mean_loss)

        conf_rows = loss_fn.conf[index, :] if '_' in losstype else None
        ref = _reference_loss(x, y, conf_rows, losstype)

        # tolerance accounts for the lw_lw approx reciprocal and the gce p**q form
        if not bool(jnp.allclose(per_sample, ref, rtol=2e-3, atol=2e-3)):
            ok = False
            print(f"MISMATCH for {losstype}:\n  got {per_sample}\n  ref {ref}")
        if not bool(jnp.allclose(mean_loss, jnp.mean(ref), rtol=2e-3, atol=2e-3)):
            ok = False
            print(f"MISMATCH (mean) for {losstype}")

    # bf16 logits path (the kernel upcasts internally; no wrapper-side cast of y)
    loss_fn_cc = PLLLossPallas(type='cc', PartialY=PartialY_all)
    x_bf16 = x.astype(jnp.bfloat16)
    per_sample_bf16 = loss_fn_cc(x_bf16, y, index, reduce=False)
    jax.block_until_ready(per_sample_bf16)
    ref_bf16 = _reference_loss(x_bf16, y, None, 'cc')
    if not bool(jnp.allclose(per_sample_bf16, ref_bf16, rtol=5e-3, atol=5e-3)):
        ok = False
        print("MISMATCH for cc (bf16 logits)")

    if ok:
        print("KERNEL_OK")
</pallas_src>

<mosaic_0001>
module attributes {stable_mosaic.version = 11 : i64} {
  func.func @kernel(%arg0: i32, %arg1: memref<32x128xf32, #tpu.memory_space<vmem>>, %arg2: memref<32x128xf32, #tpu.memory_space<vmem>>, %arg3: memref<32x1xf32, #tpu.memory_space<vmem>>) attributes {dimension_semantics = [#tpu.dimension_semantics<parallel>], iteration_bounds = array<i64: 1>, scalar_prefetch = 0 : i64, scratch_operands = 0 : i64, tpu.core_type = #tpu.core_type<tc>, window_params = [{transform_indices = @transform_0, window_bounds = array<i64: 32, 128>}, {transform_indices = @transform_1, window_bounds = array<i64: 32, 128>}, {transform_indices = @transform_2, window_bounds = array<i64: 32, 1>}]} {
    %c0 = arith.constant 0 : index
    %c0_0 = arith.constant 0 : index
    %0 = vector.load %arg1[%c0, %c0_0] : memref<32x128xf32, #tpu.memory_space<vmem>>, vector<32x128xf32>
    %c0_1 = arith.constant 0 : index
    %c0_2 = arith.constant 0 : index
    %1 = vector.load %arg2[%c0_1, %c0_2] : memref<32x128xf32, #tpu.memory_space<vmem>>, vector<32x128xf32>
    %cst = arith.constant dense<0xFF800000> : vector<32xf32>
    %2 = vector.multi_reduction <maximumf>, %0, %cst [1] : vector<32x128xf32> to vector<32xf32>
    %3 = vector.shape_cast %2 : vector<32xf32> to vector<32x1xf32>
    %4 = vector.broadcast %3 : vector<32x1xf32> to vector<32x128xf32>
    %5 = arith.subf %0, %4 : vector<32x128xf32>
    %6 = math.exp %5 : vector<32x128xf32>
    %cst_3 = arith.constant dense<0.000000e+00> : vector<32xf32>
    %7 = vector.multi_reduction <add>, %6, %cst_3 [1] : vector<32x128xf32> to vector<32xf32>
    %8 = vector.shape_cast %7 : vector<32xf32> to vector<32x1xf32>
    %9 = math.log %8 : vector<32x1xf32>
    %10 = arith.mulf %6, %1 : vector<32x128xf32>
    %cst_4 = arith.constant dense<0.000000e+00> : vector<32xf32>
    %11 = vector.multi_reduction <add>, %10, %cst_4 [1] : vector<32x128xf32> to vector<32xf32>
    %12 = vector.shape_cast %11 : vector<32xf32> to vector<32x1xf32>
    %13 = math.log %12 : vector<32x1xf32>
    %14 = arith.subf %9, %13 : vector<32x1xf32>
    %c0_5 = arith.constant 0 : index
    %c0_6 = arith.constant 0 : index
    %15 = vector.load %arg3[%c0_5, %c0_6] : memref<32x1xf32, #tpu.memory_space<vmem>>, vector<32x1xf32>
    tpu.vector_store %arg3[%c0_5, %c0_6], %14 {strides = array<i32>} : memref<32x1xf32, #tpu.memory_space<vmem>>, vector<32x1xf32>,
    return
  }
  func.func @transform_0(%arg0: i32) -> (i32, i32) {
    %c0_i32 = arith.constant 0 : i32
    %c0_i32_0 = arith.constant 0 : i32
    return %arg0, %c0_i32 : i32, i32
  }
  func.func @transform_1(%arg0: i32) -> (i32, i32) {
    %c0_i32 = arith.constant 0 : i32
    %c0_i32_0 = arith.constant 0 : i32
    return %arg0, %c0_i32 : i32, i32
  }
  func.func @transform_2(%arg0: i32) -> (i32, i32) {
    %c0_i32 = arith.constant 0 : i32
    %c0_i32_0 = arith.constant 0 : i32
    return %arg0, %c0_i32 : i32, i32
  }
}

</mosaic_0001>

<llo_original>
// kernel: pll_loss_pallas.1
$region0: #{pll_loss_pallas.1}
  #allocation0 [shape = 'u32[]', space=smem, size = 0x4, offset = 0x4, fixed_abs, tag = 'smem constant byte address 0x4 - core index']
  #allocation1 [shape = 'u32[72,128]{1,0:T(1,128)}', space=vmem, size = 0x9000, scoped, tag = 'internal scratch']
  %s0 = inlined_call_operand.hbm [shape: f32[10,128], index: 0, kind: input, shape index: {}]
  %s1 = inlined_call_operand.hbm [shape: f32[10,128], index: 1, kind: input, shape index: {}]
  %s2 = inlined_call_operand.vmem [shape: f32[10,1], index: 2, kind: output, shape index: {}]
  %s3 = sld [smem:[#allocation0]]
  $region60: #{pll_loss_pallas.1} parent=0
    _
  %s5 = ssub.s32 1, %s3
  %s6 = scalar_select 0, %s5, %s3
  $region1: #{pll_loss_pallas.1} parent=0
    #allocation2 [shape = 'u8[16384]{0}', space=vmem, size = 0x4000, scoped, tag = 'input window, operand 0, single buffered']
    #allocation3 [shape = 's32[1]{0}', space=sflag, size = 0x4, scoped, tag = 'scoped memory for pll_loss_pallas.1']
    #allocation4 [shape = 'u8[16384]{0}', space=vmem, size = 0x4000, scoped, tag = 'input window, operand 1, single buffered']
    #allocation5 [shape = 's32[1]{0}', space=sflag, size = 0x4, scoped, tag = 'scoped memory for pll_loss_pallas.1']
    #allocation6 [shape = 'u8[16384]{0}', space=vmem, size = 0x4000, scoped, tag = 'output window, operand 0, single buffered']
    %7 = vsyncpa [#allocation3], 0
    %8 = vsyncpa [#allocation5], 0
    // Predicated region
    $region2: #{pll_loss_pallas.1} parent=1 // pred_check
      _
    $region3: #{pll_loss_pallas.1} parent=1 // pred_check_branch
      %10 = sbr.rel (0) target = $region5
    $region4: #{pll_loss_pallas.1} parent=1 // pred_region
      %12 = vsyncadd [#allocation3], 256
      %s13 = sshll.u32 %s0, 4
      %s14 = int_to_ptr.hbm [resolvable:$true] %s13
      %s15 = sshll.u32 [#allocation2], 4
      %s16 = int_to_ptr.vmem [resolvable:$true] %s15
      %21 = dma.hbm_to_vmem [thread:$0]  %s14, 256, %s16, [#allocation3], 128, 128, 8
    $region5: #{pll_loss_pallas.1} parent=1 // pred_fallthru
      _
    // Predicated region
    $region6: #{pll_loss_pallas.1} parent=1 // pred_check
      _
    $region7: #{pll_loss_pallas.1} parent=1 // pred_check_branch
      %23 = sbr.rel (0) target = $region9
    $region8: #{pll_loss_pallas.1} parent=1 // pred_region
      %25 = vsyncadd [#allocation5], 256
      %s26 = sshll.u32 %s1, 4
      %s27 = int_to_ptr.hbm [resolvable:$true] %s26
      %s28 = sshll.u32 [#allocation4], 4
      %s29 = int_to_ptr.vmem [resolvable:$true] %s28
      %34 = dma.hbm_to_vmem [thread:$0]  %s27, 256, %s29, [#allocation5], 128, 128, 8
    $region9: #{pll_loss_pallas.1} parent=1 // pred_fallthru
      _
    // Predicated region
    $region10: #{pll_loss_pallas.1} parent=1 // pred_check
      _
    $region11: #{pll_loss_pallas.1} parent=1 // pred_check_branch
      %36 = sbr.rel (0) target = $region13
    $region12: #{pll_loss_pallas.1} parent=1 // pred_region
      %38 = dma.done [#allocation3], 512
    $region13: #{pll_loss_pallas.1} parent=1 // pred_fallthru
      _
    // Predicated region
    $region14: #{pll_loss_pallas.1} parent=1 // pred_check
      _
    $region15: #{pll_loss_pallas.1} parent=1 // pred_check_branch
      %40 = sbr.rel (0) target = $region17
    $region16: #{pll_loss_pallas.1} parent=1 // pred_region
      %42 = dma.done [#allocation5], 512
    $region17: #{pll_loss_pallas.1} parent=1 // pred_fallthru
      _
    %v43 = vld [vmem:[#allocation2] sm:$0xff]
    %v44 = vld [vmem:[#allocation2 + $0x8] sm:$0xff]
    %v45 = vld [vmem:[#allocation2 + $0x10] sm:$0xff]
    %v46 = vld [vmem:[#allocation2 + $0x18] sm:$0xff]
    %v47 = vld [vmem:[#allocation4] sm:$0xff]
    %v48 = vld [vmem:[#allocation4 + $0x8] sm:$0xff]
    %v49 = vld [vmem:[#allocation4 + $0x10] sm:$0xff]
    %v50 = vld [vmem:[#allocation4 + $0x18] sm:$0xff]
    %51 = vmax.xlane.f32.xlu0 %v43
    %v52 = vpop.xlane.xlu0 %51
    %53 = vmax.xlane.f32.xlu0 %v44
    %v54 = vpop.xlane.xlu0 %53
    %55 = vmax.xlane.f32.xlu0 %v45
    %v56 = vpop.xlane.xlu0 %55
    %57 = vmax.xlane.f32.xlu0 %v46
    %v58 = vpop.xlane.xlu0 %57
    %v59 = vsub.f32 %v43, %v52
    %v60 = vsub.f32 %v44, %v54
    %v61 = vsub.f32 %v45, %v56
    %v62 = vsub.f32 %v46, %v58
    %v63 = vmul.f32 %v59, 1.442695
    %v64 = vpow.pop %v63
    %v65 = vmul.f32 %v60, 1.442695
    %v66 = vpow.pop %v65
    %v67 = vmul.f32 %v61, 1.442695
    %v68 = vpow.pop %v67
    %v69 = vmul.f32 %v62, 1.442695
    %v70 = vpow.pop %v69
    %71 = vadd.xlane.f32.xlu0 %v64
    %v72 = vpop.xlane.xlu0 %71
    %73 = vadd.xlane.f32.xlu0 %v66
    %v74 = vpop.xlane.xlu0 %73
    %75 = vadd.xlane.f32.xlu0 %v68
    %v76 = vpop.xlane.xlu0 %75
    %77 = vadd.xlane.f32.xlu0 %v70
    %v78 = vpop.xlane.xlu0 %77
    %v79 = vlog2.pop %v72
    %v80 = vmul.f32 %v79, 0.6931472
    %v81 = vlog2.pop %v74
    %v82 = vmul.f32 %v81, 0.6931472
    %v83 = vlog2.pop %v76
    %v84 = vmul.f32 %v83, 0.6931472
    %v85 = vlog2.pop %v78
    %v86 = vmul.f32 %v85, 0.6931472
    %v87 = vmul.f32 %v64, %v47
    %v88 = vmul.f32 %v66, %v48
    %v89 = vmul.f32 %v68, %v49
    %v90 = vmul.f32 %v70, %v50
    %91 = vadd.xlane.f32.xlu0 %v87
    %v92 = vpop.xlane.xlu0 %91
    %93 = vadd.xlane.f32.xlu0 %v88
    %v94 = vpop.xlane.xlu0 %93
    %95 = vadd.xlane.f32.xlu0 %v89
    %v96 = vpop.xlane.xlu0 %95
    %97 = vadd.xlane.f32.xlu0 %v90
    %v98 = vpop.xlane.xlu0 %97
    %v99 = vlog2.pop %v92
    %v100 = vmul.f32 %v99, 0.6931472
    %v101 = vlog2.pop %v94
    %v102 = vmul.f32 %v101, 0.6931472
    %v103 = vlog2.pop %v96
    %v104 = vmul.f32 %v103, 0.6931472
    %v105 = vlog2.pop %v98
    %v106 = vmul.f32 %v105, 0.6931472
    %v107 = vsub.f32 %v80, %v100
    %v108 = vsub.f32 %v82, %v102
    %v109 = vsub.f32 %v84, %v104
    %v110 = vsub.f32 %v86, %v106
    %vm111 = vcmask 7168
    %112 = vst.msk [vmem:[#allocation6] sm:$0xff] %vm111, %v107
    %113 = vst.msk [vmem:[#allocation6 + $0x8] sm:$0xff] %vm111, %v108
    %114 = vst.msk [vmem:[#allocation6 + $0x10] sm:$0xff] %vm111, %v109
    %115 = vst.msk [vmem:[#allocation6 + $0x18] sm:$0xff] %vm111, %v110
    // Predicated region
    $region18: #{pll_loss_pallas.1} parent=1 // pred_check
      _
    $region19: #{pll_loss_pallas.1} parent=1 // pred_check_branch
      %117 = sbr.rel (0) target = $region21
    $region20: #{pll_loss_pallas.1} parent=1 // pred_region
      // Predicated region
      $region22: #{pll_loss_pallas.1} parent=20 // pred_check
        _
      $region23: #{pll_loss_pallas.1} parent=20 // pred_check_branch
        %119 = sbr.rel (0) target = $region25
      $region24: #{pll_loss_pallas.1} parent=20 // pred_region
        // Predicated region
        $region26: #{pll_loss_pallas.1} parent=24 // pred_check
          _
        $region27: #{pll_loss_pallas.1} parent=24 // pred_check_branch
          %121 = sbr.rel (0) target = $region29
        $region28: #{pll_loss_pallas.1} parent=24 // pred_region
          // Predicated region
          $region41: #{pll_loss_pallas.1} parent=28 // pred_check
            _
          $region42: #{pll_loss_pallas.1} parent=28 // pred_check_branch
            %139 = sbr.rel (0) target = $region44
          $region43: #{pll_loss_pallas.1} parent=28 // pred_region
            loop: start=0, step=1, limit=1
            $region45: #{pll_loss_pallas.1} parent=43 // loop_pre_header
              _
            $region46: #{pll_loss_pallas.1} parent=43 // loop_header
              %s141 = sphi 0, %s145
              %p142 = scmp.ge.s32.totalorder %s141, 1
              %s146 = sphi [#allocation6], [#allocation6]
              %s147 = sphi %s2, %s2
            $region47: #{pll_loss_pallas.1} parent=43 // loop_header_branch
              %144 = sbr.rel (%p142) target = $region51
            $region48: #{pll_loss_pallas.1} parent=43 // loop_body
              %v148 = vld [vmem:[%s146] sm:$0xff]
              %149 = vst [vmem:[%s147] sm:$0xff] %v148
              %v150 = vld [vmem:[%s146 + $0x8] sm:$0xff]
              %151 = vst [vmem:[%s147 + $0x8] sm:$0xff] %v150
            $region49: #{pll_loss_pallas.1} parent=43 // loop_footer
              %s145 = sadd.s32 1, %s141
            $region50: #{pll_loss_pallas.1} parent=43 // loop_footer_branch
              %140 = sbr.rel target = $region46
            $region51: #{pll_loss_pallas.1} parent=43 // loop_exit
              _
          $region44: #{pll_loss_pallas.1} parent=28 // pred_fallthru
            _
          // Predicated region
          $region52: #{pll_loss_pallas.1} parent=28 // pred_check
            _
          $region53: #{pll_loss_pallas.1} parent=28 // pred_check_branch
            %153 = sbr.rel target = $region55
          $region54: #{pll_loss_pallas.1} parent=28 // pred_region
            _
          $region55: #{pll_loss_pallas.1} parent=28 // pred_fallthru
            _
        $region29: #{pll_loss_pallas.1} parent=24 // pred_fallthru
          _
        // Predicated region
        $region30: #{pll_loss_pallas.1} parent=24 // pred_check
          _
        $region31: #{pll_loss_pallas.1} parent=24 // pred_check_branch
          %123 = sbr.rel target = $region33
        $region32: #{pll_loss_pallas.1} parent=24 // pred_region
          %s125 = ssub.s32 256, 1
          loop: start=0, step=1, limit=1
          $region34: #{pll_loss_pallas.1} parent=32 // loop_pre_header
            _
          $region35: #{pll_loss_pallas.1} parent=32 // loop_header
            %s127 = sphi 0, %s131
            %p128 = scmp.ge.s32.totalorder %s127, 1
            %s132 = sphi [#allocation6], [#allocation6]
            %s133 = sphi %s2, %s2
          $region36: #{pll_loss_pallas.1} parent=32 // loop_header_branch
            %130 = sbr.rel (%p128) target = $region40
          $region37: #{pll_loss_pallas.1} parent=32 // loop_body
            %v134 = vld [vmem:[%s132] sm:%s125]
            %135 = vst [vmem:[%s133] sm:%s125] %v134
            %v136 = vld [vmem:[%s132 + $0x8] sm:%s125]
            %137 = vst [vmem:[%s133 + $0x8] sm:%s125] %v136
          $region38: #{pll_loss_pallas.1} parent=32 // loop_footer
            %s131 = sadd.s32 1, %s127
          $region39: #{pll_loss_pallas.1} parent=32 // loop_footer_branch
            %126 = sbr.rel target = $region35
          $region40: #{pll_loss_pallas.1} parent=32 // loop_exit
            _
        $region33: #{pll_loss_pallas.1} parent=24 // pred_fallthru
          _
      $region25: #{pll_loss_pallas.1} parent=20 // pred_fallthru
        _
      %154 = vnop
    $region21: #{pll_loss_pallas.1} parent=1 // pred_fallthru
      _
    // Predicated region
    $region56: #{pll_loss_pallas.1} parent=1 // pred_check
      _
    $region57: #{pll_loss_pallas.1} parent=1 // pred_check_branch
      %156 = sbr.rel (0) target = $region59
    $region58: #{pll_loss_pallas.1} parent=1 // pred_region
      _
    $region59: #{pll_loss_pallas.1} parent=1 // pred_fallthru
      _
    %157 = vsyncpa [#allocation3], 1
    %158 = vsyncpa [#allocation5], 1

</llo_original>
